<compile_context>
chip_gen: v6e
topology: v6e:2x2x1
jax: 0.10.0
libtpu: 0.0.40
codegen_flags: <defaults>
</compile_context>

<pallas_src>
import jax
import jax.numpy as jnp
from jax.experimental import pallas as pl
from jax.experimental.pallas import tpu as pltpu

IN_DIM = 28 * 28   # 784
H1_DIM = 64
H2_DIM = 32
OUT_DIM = 10
OUT_W = 16         # padded output width (>= OUT_DIM); narrow to keep writeback cheap
TB_ALIGN = 16      # bf16 sublane packing for the x tile


def encoder_kernel(x_ref, w1_ref, b1_ref, w2_ref, b2_ref, w3_ref, b3_ref, o_ref):
    # x arrives already in bf16 (no in-kernel cast / no bf16 VMEM temp).
    # Layer 1 + ReLU: bf16 MXU inputs, f32 accumulation, f32 elementwise.
    h1 = jnp.dot(x_ref[...], w1_ref[...], preferred_element_type=jnp.float32)
    h1 = jnp.maximum(h1 + b1_ref[...], 0.0)
    # Layer 2 + ReLU.
    h2 = jnp.dot(h1.astype(jnp.bfloat16), w2_ref[...],
                 preferred_element_type=jnp.float32)
    h2 = jnp.maximum(h2 + b2_ref[...], 0.0)
    # Layer 3 (no activation); narrow (16-wide) output block.
    h3 = jnp.dot(h2.astype(jnp.bfloat16), w3_ref[...],
                 preferred_element_type=jnp.float32)
    o_ref[...] = (h3 + b3_ref[...]).astype(o_ref.dtype)


def _round_up(v, m):
    return ((v + m - 1) // m) * m


def encoder_forward(x, params, tb=2048):
    """x: [B, 784] (f32 or bf16) -> [B, 10] float32."""
    w1, b1, w2, b2, w3, b3 = params
    B = x.shape[0]

    # Keep activations bf16 end-to-end; cast here only if the caller hands f32.
    # (In a real pipeline the producer should already emit bf16 to avoid this
    #  extra HBM pass over x.)
    if x.dtype != jnp.bfloat16:
        x = x.astype(jnp.bfloat16)

    # Pad layer-3 weights/bias to a 16-wide output (zeros beyond col 10).
    w3p = jnp.zeros((H2_DIM, OUT_W), jnp.float32).at[:, :OUT_DIM].set(w3)
    b3p = jnp.zeros((1, OUT_W), jnp.float32).at[:, :OUT_DIM].set(b3)

    # bf16 weights for the MXU; biases stay f32 (f32 elementwise path).
    w1b = w1.astype(jnp.bfloat16)
    w2b = w2.astype(jnp.bfloat16)
    w3b = w3p.astype(jnp.bfloat16)

    # Batch tile: multiple of 16 (bf16 sublane packing), capped so the grid has
    # at least 2 steps whenever B allows it (keeps both v7x TensorCores busy).
    tb = max(TB_ALIGN, _round_up(int(tb), TB_ALIGN))
    TB = min(tb, max(TB_ALIGN, _round_up(pl.cdiv(B, 2), TB_ALIGN)))

    # No padding of x: cdiv grid + Pallas boundary masking handles the tail.
    grid = (pl.cdiv(B, TB),)

    out = pl.pallas_call(
        encoder_kernel,
        out_shape=jax.ShapeDtypeStruct((B, OUT_W), jnp.float32),
        grid=grid,
        in_specs=[
            pl.BlockSpec((TB, IN_DIM), lambda i: (i, 0)),        # x tile (pipelined, bf16)
            pl.BlockSpec((IN_DIM, H1_DIM), lambda i: (0, 0)),    # w1 (resident)
            pl.BlockSpec((1, H1_DIM), lambda i: (0, 0)),         # b1
            pl.BlockSpec((H1_DIM, H2_DIM), lambda i: (0, 0)),    # w2
            pl.BlockSpec((1, H2_DIM), lambda i: (0, 0)),         # b2
            pl.BlockSpec((H2_DIM, OUT_W), lambda i: (0, 0)),     # w3 (padded to 16)
            pl.BlockSpec((1, OUT_W), lambda i: (0, 0)),          # b3 (padded to 16)
        ],
        out_specs=pl.BlockSpec((TB, OUT_W), lambda i: (i, 0)),
        compiler_params=pltpu.CompilerParams(
            dimension_semantics=("parallel",),
            vmem_limit_bytes=32 * 1024 * 1024,
        ),
    )(x, w1b, b1, w2b, b2, w3b, b3p)

    # Cheap (16->10 lanes); a consumer tolerating the padded output can skip it.
    return out[:, :OUT_DIM]


def init_params(key):
    """Deterministic init mirroring PyTorch nn.Linear (uniform +-1/sqrt(fan_in)).

    Weights are stored as [in, out]; biases as [1, out]."""
    dims = [(IN_DIM, H1_DIM), (H1_DIM, H2_DIM), (H2_DIM, OUT_DIM)]
    params = []
    keys = jax.random.split(key, 2 * len(dims))
    for i, (fan_in, fan_out) in enumerate(dims):
        bound = 1.0 / (fan_in ** 0.5)
        w = jax.random.uniform(
            keys[2 * i], (fan_in, fan_out), jnp.float32, minval=-bound, maxval=bound
        )
        b = jax.random.uniform(
            keys[2 * i + 1], (1, fan_out), jnp.float32, minval=-bound, maxval=bound
        )
        params.extend([w, b])
    return tuple(params)


def encoder_reference(x, params):
    """Pure-JAX f32 reference for correctness checking."""
    w1, b1, w2, b2, w3, b3 = params
    h = jnp.maximum(x @ w1 + b1, 0.0)
    h = jnp.maximum(h @ w2 + b2, 0.0)
    return h @ w3 + b3


if __name__ == "__main__":
    key = jax.random.PRNGKey(0)
    k_params, k_x1, k_x2 = jax.random.split(key, 3)

    params = init_params(k_params)

    # Test 1: small batch, single grid step with a partial (masked) block.
    B1 = 8
    x1 = jax.random.normal(k_x1, (B1, IN_DIM), dtype=jnp.float32)
    out1 = jax.block_until_ready(encoder_forward(x1, params))
    ref1 = encoder_reference(x1, params)
    assert out1.shape == (B1, OUT_DIM), out1.shape
    assert jnp.allclose(out1, ref1, atol=3e-2, rtol=3e-2), "mismatch vs reference (B=8)"

    # Test 2: non-multiple-of-tile batch, multi-step grid (exercises cdiv grid +
    # boundary masking of the partial last block, no jnp.pad copy).
    B2 = 50
    x2 = jax.random.normal(k_x2, (B2, IN_DIM), dtype=jnp.float32)
    out2 = jax.block_until_ready(encoder_forward(x2, params, tb=16))
    ref2 = encoder_reference(x2, params)
    assert out2.shape == (B2, OUT_DIM), out2.shape
    assert jnp.allclose(out2, ref2, atol=3e-2, rtol=3e-2), "mismatch vs reference (B=50)"

    print("KERNEL_OK")
</pallas_src>

<mosaic_0001>
module attributes {stable_mosaic.version = 11 : i64} {
  func.func @encoder_kernel(%arg0: i32, %arg1: memref<16x784xbf16, #tpu.memory_space<vmem>>, %arg2: memref<784x64xbf16, #tpu.memory_space<vmem>>, %arg3: memref<1x64xf32, #tpu.memory_space<vmem>>, %arg4: memref<64x32xbf16, #tpu.memory_space<vmem>>, %arg5: memref<1x32xf32, #tpu.memory_space<vmem>>, %arg6: memref<32x16xbf16, #tpu.memory_space<vmem>>, %arg7: memref<1x16xf32, #tpu.memory_space<vmem>>, %arg8: memref<16x16xf32, #tpu.memory_space<vmem>>) attributes {dimension_semantics = [#tpu.dimension_semantics<parallel>], iteration_bounds = array<i64: 1>, scalar_prefetch = 0 : i64, scratch_operands = 0 : i64, tpu.core_type = #tpu.core_type<tc>, window_params = [{transform_indices = @transform_0, window_bounds = array<i64: 16, 784>}, {pipeline_mode = #tpu.pipeline_mode<synchronous>, transform_indices = @transform_1, window_bounds = array<i64: 784, 64>}, {pipeline_mode = #tpu.pipeline_mode<synchronous>, transform_indices = @transform_2, window_bounds = array<i64: 1, 64>}, {pipeline_mode = #tpu.pipeline_mode<synchronous>, transform_indices = @transform_3, window_bounds = array<i64: 64, 32>}, {pipeline_mode = #tpu.pipeline_mode<synchronous>, transform_indices = @transform_4, window_bounds = array<i64: 1, 32>}, {pipeline_mode = #tpu.pipeline_mode<synchronous>, transform_indices = @transform_5, window_bounds = array<i64: 32, 16>}, {pipeline_mode = #tpu.pipeline_mode<synchronous>, transform_indices = @transform_6, window_bounds = array<i64: 1, 16>}, {transform_indices = @transform_7, window_bounds = array<i64: 16, 16>}]} {
    %c0 = arith.constant 0 : index
    %c0_0 = arith.constant 0 : index
    %0 = vector.load %arg1[%c0, %c0_0] : memref<16x784xbf16, #tpu.memory_space<vmem>>, vector<16x784xbf16>
    %c0_1 = arith.constant 0 : index
    %c0_2 = arith.constant 0 : index
    %1 = vector.load %arg2[%c0_1, %c0_2] : memref<784x64xbf16, #tpu.memory_space<vmem>>, vector<784x64xbf16>
    %cst = arith.constant dense<0.000000e+00> : vector<16x64xf32>
    %2 = tpu.matmul %0, %1, %cst {dimension_numbers = #tpu.dot_dimension_numbers<[1], [0], [0], [1], [0, 0, 1, 1], [], []>} : vector<16x784xbf16>, vector<784x64xbf16>, vector<16x64xf32> -> vector<16x64xf32>
    %c0_3 = arith.constant 0 : index
    %c0_4 = arith.constant 0 : index
    %3 = vector.load %arg3[%c0_3, %c0_4] : memref<1x64xf32, #tpu.memory_space<vmem>>, vector<1x64xf32>
    %4 = vector.broadcast %3 : vector<1x64xf32> to vector<16x64xf32>
    %5 = arith.addf %2, %4 : vector<16x64xf32>
    %cst_5 = arith.constant 0.000000e+00 : f32
    %6 = vector.broadcast %cst_5 : f32 to vector<16x64xf32>
    %7 = arith.maximumf %5, %6 : vector<16x64xf32>
    %8 = arith.truncf %7 : vector<16x64xf32> to vector<16x64xbf16>
    %c0_6 = arith.constant 0 : index
    %c0_7 = arith.constant 0 : index
    %9 = vector.load %arg4[%c0_6, %c0_7] : memref<64x32xbf16, #tpu.memory_space<vmem>>, vector<64x32xbf16>
    %cst_8 = arith.constant dense<0.000000e+00> : vector<16x32xf32>
    %10 = tpu.matmul %8, %9, %cst_8 {dimension_numbers = #tpu.dot_dimension_numbers<[1], [0], [0], [1], [0, 0, 1, 1], [], []>} : vector<16x64xbf16>, vector<64x32xbf16>, vector<16x32xf32> -> vector<16x32xf32>
    %c0_9 = arith.constant 0 : index
    %c0_10 = arith.constant 0 : index
    %11 = vector.load %arg5[%c0_9, %c0_10] : memref<1x32xf32, #tpu.memory_space<vmem>>, vector<1x32xf32>
    %12 = vector.broadcast %11 : vector<1x32xf32> to vector<16x32xf32>
    %13 = arith.addf %10, %12 : vector<16x32xf32>
    %cst_11 = arith.constant 0.000000e+00 : f32
    %14 = vector.broadcast %cst_11 : f32 to vector<16x32xf32>
    %15 = arith.maximumf %13, %14 : vector<16x32xf32>
    %16 = arith.truncf %15 : vector<16x32xf32> to vector<16x32xbf16>
    %c0_12 = arith.constant 0 : index
    %c0_13 = arith.constant 0 : index
    %17 = vector.load %arg6[%c0_12, %c0_13] : memref<32x16xbf16, #tpu.memory_space<vmem>>, vector<32x16xbf16>
    %cst_14 = arith.constant dense<0.000000e+00> : vector<16x16xf32>
    %18 = tpu.matmul %16, %17, %cst_14 {dimension_numbers = #tpu.dot_dimension_numbers<[1], [0], [0], [1], [0, 0, 1, 1], [], []>} : vector<16x32xbf16>, vector<32x16xbf16>, vector<16x16xf32> -> vector<16x16xf32>
    %c0_15 = arith.constant 0 : index
    %c0_16 = arith.constant 0 : index
    %19 = vector.load %arg7[%c0_15, %c0_16] : memref<1x16xf32, #tpu.memory_space<vmem>>, vector<1x16xf32>
    %20 = vector.broadcast %19 : vector<1x16xf32> to vector<16x16xf32>
    %21 = arith.addf %18, %20 : vector<16x16xf32>
    %c0_17 = arith.constant 0 : index
    %c0_18 = arith.constant 0 : index
    %22 = vector.load %arg8[%c0_17, %c0_18] : memref<16x16xf32, #tpu.memory_space<vmem>>, vector<16x16xf32>
    tpu.vector_store %arg8[%c0_17, %c0_18], %21 {strides = array<i32>} : memref<16x16xf32, #tpu.memory_space<vmem>>, vector<16x16xf32>,
    return
  }
  func.func @transform_0(%arg0: i32) -> (i32, i32) {
    %c0_i32 = arith.constant 0 : i32
    %c0_i32_0 = arith.constant 0 : i32
    return %arg0, %c0_i32 : i32, i32
  }
  func.func @transform_1(%arg0: i32) -> (i32, i32) {
    %c0_i32 = arith.constant 0 : i32
    %c0_i32_0 = arith.constant 0 : i32
    %c0_i32_1 = arith.constant 0 : i32
    return %c0_i32, %c0_i32_0 : i32, i32
  }
  func.func @transform_2(%arg0: i32) -> (i32, i32) {
    %c0_i32 = arith.constant 0 : i32
    %c0_i32_0 = arith.constant 0 : i32
    %c0_i32_1 = arith.constant 0 : i32
    return %c0_i32, %c0_i32_0 : i32, i32
  }
  func.func @transform_3(%arg0: i32) -> (i32, i32) {
    %c0_i32 = arith.constant 0 : i32
    %c0_i32_0 = arith.constant 0 : i32
    %c0_i32_1 = arith.constant 0 : i32
    return %c0_i32, %c0_i32_0 : i32, i32
  }
  func.func @transform_4(%arg0: i32) -> (i32, i32) {
    %c0_i32 = arith.constant 0 : i32
    %c0_i32_0 = arith.constant 0 : i32
    %c0_i32_1 = arith.constant 0 : i32
    return %c0_i32, %c0_i32_0 : i32, i32
  }
  func.func @transform_5(%arg0: i32) -> (i32, i32) {
    %c0_i32 = arith.constant 0 : i32
    %c0_i32_0 = arith.constant 0 : i32
    %c0_i32_1 = arith.constant 0 : i32
    return %c0_i32, %c0_i32_0 : i32, i32
  }
  func.func @transform_6(%arg0: i32) -> (i32, i32) {
    %c0_i32 = arith.constant 0 : i32
    %c0_i32_0 = arith.constant 0 : i32
    %c0_i32_1 = arith.constant 0 : i32
    return %c0_i32, %c0_i32_0 : i32, i32
  }
  func.func @transform_7(%arg0: i32) -> (i32, i32) {
    %c0_i32 = arith.constant 0 : i32
    %c0_i32_0 = arith.constant 0 : i32
    return %arg0, %c0_i32 : i32, i32
  }
}

</mosaic_0001>

<llo_original>
// kernel: tpu_custom_call.1
$region0: #{tpu_custom_call.1}
  #allocation0 [shape = 'u32[]', space=smem, size = 0x4, offset = 0x4, fixed_abs, tag = 'smem constant byte address 0x4 - core index']
  #allocation1 [shape = 'u32[144,128]{1,0:T(1,128)}', space=vmem, size = 0x12000, scoped, tag = 'internal scratch']
  %s0 = inlined_call_operand.vmem [shape: bf16[8,784], index: 0, kind: input, shape index: {}]
  %s1 = inlined_call_operand.vmem [shape: bf16[784,64], index: 1, kind: input, shape index: {}]
  %s2 = inlined_call_operand.vmem [shape: f32[1,64], index: 2, kind: input, shape index: {}]
  %s3 = inlined_call_operand.vmem [shape: bf16[64,32], index: 3, kind: input, shape index: {}]
  %s4 = inlined_call_operand.vmem [shape: f32[1,32], index: 4, kind: input, shape index: {}]
  %s5 = inlined_call_operand.vmem [shape: bf16[32,16], index: 5, kind: input, shape index: {}]
  %s6 = inlined_call_operand.vmem [shape: f32[1,16], index: 6, kind: input, shape index: {}]
  %s7 = inlined_call_operand.hbm [shape: f32[8,16], index: 7, kind: output, shape index: {}]
  %s8 = sld [smem:[#allocation0]]
  $region38: #{tpu_custom_call.1} parent=0
    _
  %s10 = ssub.s32 1, %s8
  %s11 = scalar_select 0, %s10, %s8
  $region1: #{tpu_custom_call.1} parent=0
    #allocation2 [shape = 'u8[8192]{0}', space=vmem, size = 0x2000, scoped, tag = 'output window, operand 0, single buffered']
    #allocation3 [shape = 's32[1]{0}', space=sflag, size = 0x4, scoped, tag = 'scoped memory for tpu_custom_call.1']
    %12 = vsyncpa [#allocation3], 0
    // Predicated region
    $region2: #{tpu_custom_call.1} parent=1 // pred_check
      _
    $region3: #{tpu_custom_call.1} parent=1 // pred_check_branch
      %14 = sbr.rel (0) target = $region5
    $region4: #{tpu_custom_call.1} parent=1 // pred_region
      _
    $region5: #{tpu_custom_call.1} parent=1 // pred_fallthru
      _
    // Predicated region
    $region6: #{tpu_custom_call.1} parent=1 // pred_check
      _
    $region7: #{tpu_custom_call.1} parent=1 // pred_check_branch
      %16 = sbr.rel (0) target = $region9
    $region8: #{tpu_custom_call.1} parent=1 // pred_region
      _
    $region9: #{tpu_custom_call.1} parent=1 // pred_fallthru
      _
    // Predicated region
    $region10: #{tpu_custom_call.1} parent=1 // pred_check
      _
    $region11: #{tpu_custom_call.1} parent=1 // pred_check_branch
      %18 = sbr.rel (0) target = $region13
    $region12: #{tpu_custom_call.1} parent=1 // pred_region
      _
    $region13: #{tpu_custom_call.1} parent=1 // pred_fallthru
      _
    // Predicated region
    $region14: #{tpu_custom_call.1} parent=1 // pred_check
      _
    $region15: #{tpu_custom_call.1} parent=1 // pred_check_branch
      %20 = sbr.rel (0) target = $region17
    $region16: #{tpu_custom_call.1} parent=1 // pred_region
      _
    $region17: #{tpu_custom_call.1} parent=1 // pred_fallthru
      _
    // Predicated region
    $region18: #{tpu_custom_call.1} parent=1 // pred_check
      _
    $region19: #{tpu_custom_call.1} parent=1 // pred_check_branch
      %22 = sbr.rel (0) target = $region21
    $region20: #{tpu_custom_call.1} parent=1 // pred_region
      _
    $region21: #{tpu_custom_call.1} parent=1 // pred_fallthru
      _
    // Predicated region
    $region22: #{tpu_custom_call.1} parent=1 // pred_check
      _
    $region23: #{tpu_custom_call.1} parent=1 // pred_check_branch
      %24 = sbr.rel (0) target = $region25
    $region24: #{tpu_custom_call.1} parent=1 // pred_region
      _
    $region25: #{tpu_custom_call.1} parent=1 // pred_fallthru
      _
    // Predicated region
    $region26: #{tpu_custom_call.1} parent=1 // pred_check
      _
    $region27: #{tpu_custom_call.1} parent=1 // pred_check_branch
      %26 = sbr.rel (0) target = $region29
    $region28: #{tpu_custom_call.1} parent=1 // pred_region
      _
    $region29: #{tpu_custom_call.1} parent=1 // pred_fallthru
      _
    %v28 = vld [vmem:[%s0] sm:$0xff]
    %v29 = vld [vmem:[%s0 + $0x8] sm:$0xff]
    %v30 = vld [vmem:[%s0 + $0x10] sm:$0xff]
    %v31 = vld [vmem:[%s0 + $0x18] sm:$0xf]
    %v32 = vld [vmem:[%s0 + $0x1c] sm:$0xff]
    %v33 = vld [vmem:[%s0 + $0x24] sm:$0xff]
    %v34 = vld [vmem:[%s0 + $0x2c] sm:$0xff]
    %v35 = vld [vmem:[%s0 + $0x34] sm:$0xf]
    %v36 = vld [vmem:[%s1] sm:$0xf]
    %v37 = vld [vmem:[%s1 + $0x4] sm:$0xf]
    %v38 = vld [vmem:[%s1 + $0x8] sm:$0xf]
    %v39 = vld [vmem:[%s1 + $0xc] sm:$0xf]
    %v40 = vld [vmem:[%s1 + $0x10] sm:$0xf]
    %v41 = vld [vmem:[%s1 + $0x14] sm:$0xf]
    %v42 = vld [vmem:[%s1 + $0x18] sm:$0xf]
    %v43 = vld [vmem:[%s1 + $0x1c] sm:$0xf]
    %v44 = vld [vmem:[%s1 + $0x20] sm:$0xf]
    %v45 = vld [vmem:[%s1 + $0x24] sm:$0xf]
    %v46 = vld [vmem:[%s1 + $0x28] sm:$0xf]
    %v47 = vld [vmem:[%s1 + $0x2c] sm:$0xf]
    %v48 = vld [vmem:[%s1 + $0x30] sm:$0xf]
    %v49 = vld [vmem:[%s1 + $0x34] sm:$0xf]
    %v50 = vld [vmem:[%s1 + $0x38] sm:$0xf]
    %v51 = vld [vmem:[%s1 + $0x3c] sm:$0xf]
    %v52 = vld [vmem:[%s1 + $0x40] sm:$0xf]
    %v53 = vld [vmem:[%s1 + $0x44] sm:$0xf]
    %v54 = vld [vmem:[%s1 + $0x48] sm:$0xf]
    %v55 = vld [vmem:[%s1 + $0x4c] sm:$0xf]
    %v56 = vld [vmem:[%s1 + $0x50] sm:$0xf]
    %v57 = vld [vmem:[%s1 + $0x54] sm:$0xf]
    %v58 = vld [vmem:[%s1 + $0x58] sm:$0xf]
    %v59 = vld [vmem:[%s1 + $0x5c] sm:$0xf]
    %v60 = vld [vmem:[%s1 + $0x60] sm:$0xf]
    %v61 = vld [vmem:[%s1 + $0x64] sm:$0xf]
    %v62 = vld [vmem:[%s1 + $0x68] sm:$0xf]
    %v63 = vld [vmem:[%s1 + $0x6c] sm:$0xf]
    %v64 = vld [vmem:[%s1 + $0x70] sm:$0xf]
    %v65 = vld [vmem:[%s1 + $0x74] sm:$0xf]
    %v66 = vld [vmem:[%s1 + $0x78] sm:$0xf]
    %v67 = vld [vmem:[%s1 + $0x7c] sm:$0xf]
    %v68 = vld [vmem:[%s1 + $0x80] sm:$0xf]
    %v69 = vld [vmem:[%s1 + $0x84] sm:$0xf]
    %v70 = vld [vmem:[%s1 + $0x88] sm:$0xf]
    %v71 = vld [vmem:[%s1 + $0x8c] sm:$0xf]
    %v72 = vld [vmem:[%s1 + $0x90] sm:$0xf]
    %v73 = vld [vmem:[%s1 + $0x94] sm:$0xf]
    %v74 = vld [vmem:[%s1 + $0x98] sm:$0xf]
    %v75 = vld [vmem:[%s1 + $0x9c] sm:$0xf]
    %v76 = vld [vmem:[%s1 + $0xa0] sm:$0xf]
    %v77 = vld [vmem:[%s1 + $0xa4] sm:$0xf]
    %v78 = vld [vmem:[%s1 + $0xa8] sm:$0xf]
    %v79 = vld [vmem:[%s1 + $0xac] sm:$0xf]
    %v80 = vld [vmem:[%s1 + $0xb0] sm:$0xf]
    %v81 = vld [vmem:[%s1 + $0xb4] sm:$0xf]
    %v82 = vld [vmem:[%s1 + $0xb8] sm:$0xf]
    %v83 = vld [vmem:[%s1 + $0xbc] sm:$0xf]
    %v84 = vld [vmem:[%s1 + $0xc0] sm:$0xf]
    %v85 = vld [vmem:[%s1 + $0xc4] sm:$0xf]
    %v86 = vld [vmem:[%s1 + $0xc8] sm:$0xf]
    %v87 = vld [vmem:[%s1 + $0xcc] sm:$0xf]
    %v88 = vld [vmem:[%s1 + $0xd0] sm:$0xf]
    %v89 = vld [vmem:[%s1 + $0xd4] sm:$0xf]
    %v90 = vld [vmem:[%s1 + $0xd8] sm:$0xf]
    %v91 = vld [vmem:[%s1 + $0xdc] sm:$0xf]
    %v92 = vld [vmem:[%s1 + $0xe0] sm:$0xf]
    %v93 = vld [vmem:[%s1 + $0xe4] sm:$0xf]
    %v94 = vld [vmem:[%s1 + $0xe8] sm:$0xf]
    %v95 = vld [vmem:[%s1 + $0xec] sm:$0xf]
    %v96 = vld [vmem:[%s1 + $0xf0] sm:$0xf]
    %v97 = vld [vmem:[%s1 + $0xf4] sm:$0xf]
    %v98 = vld [vmem:[%s1 + $0xf8] sm:$0xf]
    %v99 = vld [vmem:[%s1 + $0xfc] sm:$0xf]
    %v100 = vld [vmem:[%s1 + $0x100] sm:$0xf]
    %v101 = vld [vmem:[%s1 + $0x104] sm:$0xf]
    %v102 = vld [vmem:[%s1 + $0x108] sm:$0xf]
    %v103 = vld [vmem:[%s1 + $0x10c] sm:$0xf]
    %v104 = vld [vmem:[%s1 + $0x110] sm:$0xf]
    %v105 = vld [vmem:[%s1 + $0x114] sm:$0xf]
    %v106 = vld [vmem:[%s1 + $0x118] sm:$0xf]
    %v107 = vld [vmem:[%s1 + $0x11c] sm:$0xf]
    %v108 = vld [vmem:[%s1 + $0x120] sm:$0xf]
    %v109 = vld [vmem:[%s1 + $0x124] sm:$0xf]
    %v110 = vld [vmem:[%s1 + $0x128] sm:$0xf]
    %v111 = vld [vmem:[%s1 + $0x12c] sm:$0xf]
    %v112 = vld [vmem:[%s1 + $0x130] sm:$0xf]
    %v113 = vld [vmem:[%s1 + $0x134] sm:$0xf]
    %v114 = vld [vmem:[%s1 + $0x138] sm:$0xf]
    %v115 = vld [vmem:[%s1 + $0x13c] sm:$0xf]
    %v116 = vld [vmem:[%s1 + $0x140] sm:$0xf]
    %v117 = vld [vmem:[%s1 + $0x144] sm:$0xf]
    %v118 = vld [vmem:[%s1 + $0x148] sm:$0xf]
    %v119 = vld [vmem:[%s1 + $0x14c] sm:$0xf]
    %v120 = vld [vmem:[%s1 + $0x150] sm:$0xf]
    %v121 = vld [vmem:[%s1 + $0x154] sm:$0xf]
    %v122 = vld [vmem:[%s1 + $0x158] sm:$0xf]
    %v123 = vld [vmem:[%s1 + $0x15c] sm:$0xf]
    %v124 = vld [vmem:[%s1 + $0x160] sm:$0xf]
    %v125 = vld [vmem:[%s1 + $0x164] sm:$0xf]
    %v126 = vld [vmem:[%s1 + $0x168] sm:$0xf]
    %v127 = vld [vmem:[%s1 + $0x16c] sm:$0xf]
    %v128 = vld [vmem:[%s1 + $0x170] sm:$0xf]
    %v129 = vld [vmem:[%s1 + $0x174] sm:$0xf]
    %v130 = vld [vmem:[%s1 + $0x178] sm:$0xf]
    %v131 = vld [vmem:[%s1 + $0x17c] sm:$0xf]
    %v132 = vld [vmem:[%s1 + $0x180] sm:$0xf]
    %v133 = vld [vmem:[%s1 + $0x184] sm:$0xf]
    %v134 = vld [vmem:[%s2] sm:$0x1]
    %v136 = vlaneseq
    %v137 = vshrl.u32 %v136, 7
    %v138 = vsub.s32 0, %v137
    %v139 = vrot.slane %v134, %v138
    %v149 = vunpack.c.l.b16 %v28
    %v150 = vunpack.c.h.b16 %v28
    %v151 = vunpack.c.l.b16 %v29
    %v152 = vunpack.c.h.b16 %v29
    %v153 = vunpack.c.l.b16 %v30
    %v154 = vunpack.c.h.b16 %v30
    %v155 = vunpack.c.l.b16 %v31
    %v156 = vunpack.c.l.b16 %v32
    %v157 = vunpack.c.h.b16 %v32
    %v158 = vunpack.c.l.b16 %v33
    %v159 = vunpack.c.h.b16 %v33
    %v160 = vunpack.c.l.b16 %v34
    %v161 = vunpack.c.h.b16 %v34
    %v162 = vunpack.c.l.b16 %v35
    %v163 = vpack.c.b16 %v156, %v149
    %v164 = vpack.c.b16 %v157, %v150
    %v165 = vpack.c.b16 %v158, %v151
    %v166 = vpack.c.b16 %v159, %v152
    %v167 = vpack.c.b16 %v160, %v153
    %v168 = vpack.c.b16 %v161, %v154
    %v169 = vpack.c.b16 %v162, %v155
    %v274 = vunpack.c.l.b16 %v36
    %v275 = vunpack.c.l.b16 %v37
    %v276 = vunpack.c.l.b16 %v38
    %v277 = vunpack.c.l.b16 %v39
    %v278 = vunpack.c.l.b16 %v40
    %v279 = vunpack.c.l.b16 %v41
    %v280 = vunpack.c.l.b16 %v42
    %v281 = vunpack.c.l.b16 %v43
    %v282 = vunpack.c.l.b16 %v44
    %v283 = vunpack.c.l.b16 %v45
    %v284 = vunpack.c.l.b16 %v46
    %v285 = vunpack.c.l.b16 %v47
    %v286 = vunpack.c.l.b16 %v48
    %v287 = vunpack.c.l.b16 %v49
    %v288 = vunpack.c.l.b16 %v50
    %v289 = vunpack.c.l.b16 %v51
    %v290 = vunpack.c.l.b16 %v52
    %v291 = vunpack.c.l.b16 %v53
    %v292 = vunpack.c.l.b16 %v54
    %v293 = vunpack.c.l.b16 %v55
    %v294 = vunpack.c.l.b16 %v56
    %v295 = vunpack.c.l.b16 %v57
    %v296 = vunpack.c.l.b16 %v58
    %v297 = vunpack.c.l.b16 %v59
    %v298 = vunpack.c.l.b16 %v60
    %v299 = vunpack.c.l.b16 %v61
    %v300 = vunpack.c.l.b16 %v62
    %v301 = vunpack.c.l.b16 %v63
    %v302 = vunpack.c.l.b16 %v64
    %v303 = vunpack.c.l.b16 %v65
    %v304 = vunpack.c.l.b16 %v66
    %v305 = vunpack.c.l.b16 %v67
    %v306 = vunpack.c.l.b16 %v68
    %v307 = vunpack.c.l.b16 %v69
    %v308 = vunpack.c.l.b16 %v70
    %v309 = vunpack.c.l.b16 %v71
    %v310 = vunpack.c.l.b16 %v72
    %v311 = vunpack.c.l.b16 %v73
    %v312 = vunpack.c.l.b16 %v74
    %v313 = vunpack.c.l.b16 %v75
    %v314 = vunpack.c.l.b16 %v76
    %v315 = vunpack.c.l.b16 %v77
    %v316 = vunpack.c.l.b16 %v78
    %v317 = vunpack.c.l.b16 %v79
    %v318 = vunpack.c.l.b16 %v80
    %v319 = vunpack.c.l.b16 %v81
    %v320 = vunpack.c.l.b16 %v82
    %v321 = vunpack.c.l.b16 %v83
    %v322 = vunpack.c.l.b16 %v84
    %v323 = vunpack.c.l.b16 %v85
    %v324 = vunpack.c.l.b16 %v86
    %v325 = vunpack.c.l.b16 %v87
    %v326 = vunpack.c.l.b16 %v88
    %v327 = vunpack.c.l.b16 %v89
    %v328 = vunpack.c.l.b16 %v90
    %v329 = vunpack.c.l.b16 %v91
    %v330 = vunpack.c.l.b16 %v92
    %v331 = vunpack.c.l.b16 %v93
    %v332 = vunpack.c.l.b16 %v94
    %v333 = vunpack.c.l.b16 %v95
    %v334 = vunpack.c.l.b16 %v96
    %v335 = vunpack.c.l.b16 %v97
    %v336 = vunpack.c.l.b16 %v98
    %v337 = vunpack.c.l.b16 %v99
    %v338 = vunpack.c.l.b16 %v100
    %v339 = vunpack.c.l.b16 %v101
    %v340 = vunpack.c.l.b16 %v102
    %v341 = vunpack.c.l.b16 %v103
    %v342 = vunpack.c.l.b16 %v104
    %v343 = vunpack.c.l.b16 %v105
    %v344 = vunpack.c.l.b16 %v106
    %v345 = vunpack.c.l.b16 %v107
    %v346 = vunpack.c.l.b16 %v108
    %v347 = vunpack.c.l.b16 %v109
    %v348 = vunpack.c.l.b16 %v110
    %v349 = vunpack.c.l.b16 %v111
    %v350 = vunpack.c.l.b16 %v112
    %v351 = vunpack.c.l.b16 %v113
    %v352 = vunpack.c.l.b16 %v114
    %v353 = vunpack.c.l.b16 %v115
    %v354 = vunpack.c.l.b16 %v116
    %v355 = vunpack.c.l.b16 %v117
    %v356 = vunpack.c.l.b16 %v118
    %v357 = vunpack.c.l.b16 %v119
    %v358 = vunpack.c.l.b16 %v120
    %v359 = vunpack.c.l.b16 %v121
    %v360 = vunpack.c.l.b16 %v122
    %v361 = vunpack.c.l.b16 %v123
    %v362 = vunpack.c.l.b16 %v124
    %v363 = vunpack.c.l.b16 %v125
    %v364 = vunpack.c.l.b16 %v126
    %v365 = vunpack.c.l.b16 %v127
    %v366 = vunpack.c.l.b16 %v128
    %v367 = vunpack.c.l.b16 %v129
    %v368 = vunpack.c.l.b16 %v130
    %v369 = vunpack.c.l.b16 %v131
    %v370 = vunpack.c.l.b16 %v132
    %v371 = vunpack.c.l.b16 %v133
    %v372 = vpack.c.b16 %v275, %v274
    %v373 = vpack.c.b16 %v277, %v276
    %v374 = vpack.c.b16 %v279, %v278
    %v375 = vpack.c.b16 %v281, %v280
    %v376 = vpack.c.b16 %v283, %v282
    %v377 = vpack.c.b16 %v285, %v284
    %v378 = vpack.c.b16 %v287, %v286
    %v379 = vpack.c.b16 %v289, %v288
    %v380 = vpack.c.b16 %v291, %v290
    %v381 = vpack.c.b16 %v293, %v292
    %v382 = vpack.c.b16 %v295, %v294
    %v383 = vpack.c.b16 %v297, %v296
    %v384 = vpack.c.b16 %v299, %v298
    %v385 = vpack.c.b16 %v301, %v300
    %v386 = vpack.c.b16 %v303, %v302
    %v387 = vpack.c.b16 %v305, %v304
    %v388 = vpack.c.b16 %v307, %v306
    %v389 = vpack.c.b16 %v309, %v308
    %v390 = vpack.c.b16 %v311, %v310
    %v391 = vpack.c.b16 %v313, %v312
    %v392 = vpack.c.b16 %v315, %v314
    %v393 = vpack.c.b16 %v317, %v316
    %v394 = vpack.c.b16 %v319, %v318
    %v395 = vpack.c.b16 %v321, %v320
    %v396 = vpack.c.b16 %v323, %v322
    %v397 = vpack.c.b16 %v325, %v324
    %v398 = vpack.c.b16 %v327, %v326
    %v399 = vpack.c.b16 %v329, %v328
    %v400 = vpack.c.b16 %v331, %v330
    %v401 = vpack.c.b16 %v333, %v332
    %v402 = vpack.c.b16 %v335, %v334
    %v403 = vpack.c.b16 %v337, %v336
    %v404 = vpack.c.b16 %v339, %v338
    %v405 = vpack.c.b16 %v341, %v340
    %v406 = vpack.c.b16 %v343, %v342
    %v407 = vpack.c.b16 %v345, %v344
    %v408 = vpack.c.b16 %v347, %v346
    %v409 = vpack.c.b16 %v349, %v348
    %v410 = vpack.c.b16 %v351, %v350
    %v411 = vpack.c.b16 %v353, %v352
    %v412 = vpack.c.b16 %v355, %v354
    %v413 = vpack.c.b16 %v357, %v356
    %v414 = vpack.c.b16 %v359, %v358
    %v415 = vpack.c.b16 %v361, %v360
    %v416 = vpack.c.b16 %v363, %v362
    %v417 = vpack.c.b16 %v365, %v364
    %v418 = vpack.c.b16 %v367, %v366
    %v419 = vpack.c.b16 %v369, %v368
    %v420 = vpack.c.b16 %v371, %v370
    %vm470 = vcmask 130048
    %v472 = vsel %vm470, %v169, 0
    %474 = vmatprep.subr.bf16.mxu0 0
    %475 = vmatpush1.bf16.msra.mxu0 %v379
    %476 = vmatprep.subr.bf16.mxu0 0
    %477 = vmatpush1.bf16.msra.mxu0 %v378
    %478 = vmatprep.subr.bf16.mxu0 0
    %479 = vmatpush1.bf16.msra.mxu0 %v377
    %480 = vmatprep.subr.bf16.mxu0 0
    %481 = vmatpush1.bf16.msra.mxu0 %v376
    %482 = vmatprep.subr.bf16.mxu0 0
    %483 = vmatpush1.bf16.msra.mxu0 %v375
    %484 = vmatprep.subr.bf16.mxu0 0
    %485 = vmatpush1.bf16.msra.mxu0 %v374
    %486 = vmatprep.subr.bf16.mxu0 0
    %487 = vmatpush1.bf16.msra.mxu0 %v373
    %488 = vmatprep.subr.bf16.mxu0 0
    %489 = vmatpush1.bf16.msra.mxu0 %v372
    %490 = vmatprep.subr.bf16.mxu0 0
    %491 = vmatpush2.bf16.msra.mxu0 %v387
    %492 = vmatprep.subr.bf16.mxu0 0
    %493 = vmatpush2.bf16.msra.mxu0 %v386
    %494 = vmatprep.subr.bf16.mxu0 0
    %495 = vmatpush2.bf16.msra.mxu0 %v385
    %496 = vmatprep.subr.bf16.mxu0 0
    %497 = vmatpush2.bf16.msra.mxu0 %v384
    %498 = vmatprep.subr.bf16.mxu0 0
    %499 = vmatpush2.bf16.msra.mxu0 %v383
    %500 = vmatprep.subr.bf16.mxu0 0
    %501 = vmatpush2.bf16.msra.mxu0 %v382
    %502 = vmatprep.subr.bf16.mxu0 0
    %503 = vmatpush2.bf16.msra.mxu0 %v381
    %504 = vmatprep.subr.bf16.mxu0 0
    %505 = vmatpush2.bf16.msra.mxu0 %v380
    %506 = vmatprep.mubr.bf16.mxu0 %v164
    %507 = vmatmul.mubr.bf16.gmra.mxu0 %v163
    %v508 = vpop.f32.mrf.mxu0
    %v509 = vadd.f32 %v139, %v508
    %v510 = vpop.f32.mrf.mxu0
    %v511 = vpop.f32.mrf.mxu0
    %v512 = vadd.f32 %v139, %v511
    %v513 = vpop.f32.mrf.mxu0
    %514 = vdwg.mxu0
    %515 = vmatprep.subr.bf16.mxu0 0
    %516 = vmatpush1.bf16.msra.mxu0 %v395
    %517 = vmatprep.subr.bf16.mxu0 0
    %518 = vmatpush1.bf16.msra.mxu0 %v394
    %519 = vmatprep.subr.bf16.mxu0 0
    %520 = vmatpush1.bf16.msra.mxu0 %v393
    %521 = vmatprep.subr.bf16.mxu0 0
    %522 = vmatpush1.bf16.msra.mxu0 %v392
    %523 = vmatprep.subr.bf16.mxu0 0
    %524 = vmatpush1.bf16.msra.mxu0 %v391
    %525 = vmatprep.subr.bf16.mxu0 0
    %526 = vmatpush1.bf16.msra.mxu0 %v390
    %527 = vmatprep.subr.bf16.mxu0 0
    %528 = vmatpush1.bf16.msra.mxu0 %v389
    %529 = vmatprep.subr.bf16.mxu0 0
    %530 = vmatpush1.bf16.msra.mxu0 %v388
    %531 = vmatprep.subr.bf16.mxu0 0
    %532 = vmatpush2.bf16.msra.mxu0 %v403
    %533 = vmatprep.subr.bf16.mxu0 0
    %534 = vmatpush2.bf16.msra.mxu0 %v402
    %535 = vmatprep.subr.bf16.mxu0 0
    %536 = vmatpush2.bf16.msra.mxu0 %v401
    %537 = vmatprep.subr.bf16.mxu0 0
    %538 = vmatpush2.bf16.msra.mxu0 %v400
    %539 = vmatprep.subr.bf16.mxu0 0
    %540 = vmatpush2.bf16.msra.mxu0 %v399
    %541 = vmatprep.subr.bf16.mxu0 0
    %542 = vmatpush2.bf16.msra.mxu0 %v398
    %543 = vmatprep.subr.bf16.mxu0 0
    %544 = vmatpush2.bf16.msra.mxu0 %v397
    %545 = vmatprep.subr.bf16.mxu0 0
    %546 = vmatpush2.bf16.msra.mxu0 %v396
    %547 = vmatprep.mubr.bf16.mxu0 %v166
    %548 = vmatmul.mubr.bf16.gmra.mxu0 %v165
    %v549 = vpop.f32.mrf.mxu0
    %v550 = vadd.f32 %v509, %v549
    %v551 = vpop.f32.mrf.mxu0
    %v552 = vpop.f32.mrf.mxu0
    %v553 = vadd.f32 %v512, %v552
    %v554 = vpop.f32.mrf.mxu0
    %555 = vdwg.mxu0
    %556 = vmatprep.subr.bf16.mxu0 0
    %557 = vmatpush1.bf16.msra.mxu0 %v411
    %558 = vmatprep.subr.bf16.mxu0 0
    %559 = vmatpush1.bf16.msra.mxu0 %v410
    %560 = vmatprep.subr.bf16.mxu0 0
    %561 = vmatpush1.bf16.msra.mxu0 %v409
    %562 = vmatprep.subr.bf16.mxu0 0
    %563 = vmatpush1.bf16.msra.mxu0 %v408
    %564 = vmatprep.subr.bf16.mxu0 0
    %565 = vmatpush1.bf16.msra.mxu0 %v407
    %566 = vmatprep.subr.bf16.mxu0 0
    %567 = vmatpush1.bf16.msra.mxu0 %v406
    %568 = vmatprep.subr.bf16.mxu0 0
    %569 = vmatpush1.bf16.msra.mxu0 %v405
    %570 = vmatprep.subr.bf16.mxu0 0
    %571 = vmatpush1.bf16.msra.mxu0 %v404
    %572 = vmatprep.subr.bf16.mxu0 0
    %573 = vmatpush2.bf16.msra.mxu0 %v419
    %574 = vmatprep.subr.bf16.mxu0 0
    %575 = vmatpush2.bf16.msra.mxu0 %v418
    %576 = vmatprep.subr.bf16.mxu0 0
    %577 = vmatpush2.bf16.msra.mxu0 %v417
    %578 = vmatprep.subr.bf16.mxu0 0
    %579 = vmatpush2.bf16.msra.mxu0 %v416
    %580 = vmatprep.subr.bf16.mxu0 0
    %581 = vmatpush2.bf16.msra.mxu0 %v415
    %582 = vmatprep.subr.bf16.mxu0 0
    %583 = vmatpush2.bf16.msra.mxu0 %v414
    %584 = vmatprep.subr.bf16.mxu0 0
    %585 = vmatpush2.bf16.msra.mxu0 %v413
    %586 = vmatprep.subr.bf16.mxu0 0
    %587 = vmatpush2.bf16.msra.mxu0 %v412
    %588 = vmatprep.mubr.bf16.mxu0 %v168
    %589 = vmatmul.mubr.bf16.gmra.mxu0 %v167
    %v590 = vpop.f32.mrf.mxu0
    %v591 = vadd.f32 %v550, %v590
    %v592 = vpop.f32.mrf.mxu0
    %v593 = vpop.f32.mrf.mxu0
    %v594 = vadd.f32 %v553, %v593
    %v595 = vpop.f32.mrf.mxu0
    %596 = vdwg.mxu0
    %597 = vmatprep.subr.bf16.mxu0 0
    %598 = vmatpush1.bf16.msra.mxu0 0
    %599 = vmatprep.subr.bf16.mxu0 0
    %600 = vmatpush1.bf16.msra.mxu0 0
    %601 = vmatprep.subr.bf16.mxu0 0
    %602 = vmatpush1.bf16.msra.mxu0 0
    %603 = vmatprep.subr.bf16.mxu0 0
    %604 = vmatpush1.bf16.msra.mxu0 0
    %605 = vmatprep.subr.bf16.mxu0 0
    %606 = vmatpush1.bf16.msra.mxu0 0
    %607 = vmatprep.subr.bf16.mxu0 0
    %608 = vmatpush1.bf16.msra.mxu0 0
    %609 = vmatprep.subr.bf16.mxu0 0
    %610 = vmatpush1.bf16.msra.mxu0 0
    %611 = vmatprep.subr.bf16.mxu0 0
    %612 = vmatpush1.bf16.msra.mxu0 %v420
    %613 = vmatprep.subr.bf16.mxu0 0
    %614 = vmatpush2.bf16.msra.mxu0 0
    %615 = vmatprep.subr.bf16.mxu0 0
    %616 = vmatpush2.bf16.msra.mxu0 0
    %617 = vmatprep.subr.bf16.mxu0 0
    %618 = vmatpush2.bf16.msra.mxu0 0
    %619 = vmatprep.subr.bf16.mxu0 0
    %620 = vmatpush2.bf16.msra.mxu0 0
    %621 = vmatprep.subr.bf16.mxu0 0
    %622 = vmatpush2.bf16.msra.mxu0 0
    %623 = vmatprep.subr.bf16.mxu0 0
    %624 = vmatpush2.bf16.msra.mxu0 0
    %625 = vmatprep.subr.bf16.mxu0 0
    %626 = vmatpush2.bf16.msra.mxu0 0
    %627 = vmatprep.subr.bf16.mxu0 0
    %628 = vmatpush2.bf16.msra.mxu0 0
    %629 = vmatprep.mubr.bf16.mxu0 0
    %630 = vmatmul.mubr.bf16.gmra.mxu0 %v472
    %v631 = vpop.f32.mrf.mxu0
    %v632 = vadd.f32 %v591, %v631
    %v633 = vpop.f32.mrf.mxu0
    %v634 = vpop.f32.mrf.mxu0
    %v635 = vadd.f32 %v594, %v634
    %v636 = vpop.f32.mrf.mxu0
    %637 = vdwg.mxu0
    %v638 = vmax.f32 %v632, 0.0
    %v639 = vmax.f32 %v635, 0.0
    %v640 = vpack.c.bf16 %v639, %v638
    %v641 = vld [vmem:[%s3] sm:$0xf]
    %v642 = vld [vmem:[%s3 + $0x4] sm:$0xf]
    %v643 = vld [vmem:[%s3 + $0x8] sm:$0xf]
    %v644 = vld [vmem:[%s3 + $0xc] sm:$0xf]
    %v645 = vld [vmem:[%s3 + $0x10] sm:$0xf]
    %v646 = vld [vmem:[%s3 + $0x14] sm:$0xf]
    %v647 = vld [vmem:[%s3 + $0x18] sm:$0xf]
    %v648 = vld [vmem:[%s3 + $0x1c] sm:$0xf]
    %v649 = vld [vmem:[%s4] sm:$0x1]
    %v651 = vlaneseq
    %v652 = vshrl.u32 %v651, 7
    %v653 = vsub.s32 0, %v652
    %v654 = vrot.slane %v649, %v653
    %v664 = vunpack.c.l.b16 %v641
    %v665 = vunpack.c.l.b16 %v642
    %v666 = vunpack.c.l.b16 %v643
    %v667 = vunpack.c.l.b16 %v644
    %v668 = vunpack.c.l.b16 %v645
    %v669 = vunpack.c.l.b16 %v646
    %v670 = vunpack.c.l.b16 %v647
    %v671 = vunpack.c.l.b16 %v648
    %v672 = vpack.c.b16 %v665, %v664
    %v673 = vpack.c.b16 %v667, %v666
    %v674 = vpack.c.b16 %v669, %v668
    %v675 = vpack.c.b16 %v671, %v670
    %vm680 = vcmask 523264
    %v682 = vsel %vm680, %v640, 0
    %684 = vmatprep.subr.bf16.mxu0 0
    %685 = vmatpush1.bf16.msra.mxu0 0
    %686 = vmatprep.subr.bf16.mxu0 0
    %687 = vmatpush1.bf16.msra.mxu0 0
    %688 = vmatprep.subr.bf16.mxu0 0
    %689 = vmatpush1.bf16.msra.mxu0 0
    %690 = vmatprep.subr.bf16.mxu0 0
    %691 = vmatpush1.bf16.msra.mxu0 0
    %692 = vmatprep.subr.bf16.mxu0 0
    %693 = vmatpush1.bf16.msra.mxu0 %v675
    %694 = vmatprep.subr.bf16.mxu0 0
    %695 = vmatpush1.bf16.msra.mxu0 %v674
    %696 = vmatprep.subr.bf16.mxu0 0
    %697 = vmatpush1.bf16.msra.mxu0 %v673
    %698 = vmatprep.subr.bf16.mxu0 0
    %699 = vmatpush1.bf16.msra.mxu0 %v672
    %700 = vmatprep.subr.bf16.mxu0 0
    %701 = vmatpush2.bf16.msra.mxu0 0
    %702 = vmatprep.subr.bf16.mxu0 0
    %703 = vmatpush2.bf16.msra.mxu0 0
    %704 = vmatprep.subr.bf16.mxu0 0
    %705 = vmatpush2.bf16.msra.mxu0 0
    %706 = vmatprep.subr.bf16.mxu0 0
    %707 = vmatpush2.bf16.msra.mxu0 0
    %708 = vmatprep.subr.bf16.mxu0 0
    %709 = vmatpush2.bf16.msra.mxu0 0
    %710 = vmatprep.subr.bf16.mxu0 0
    %711 = vmatpush2.bf16.msra.mxu0 0
    %712 = vmatprep.subr.bf16.mxu0 0
    %713 = vmatpush2.bf16.msra.mxu0 0
    %714 = vmatprep.subr.bf16.mxu0 0
    %715 = vmatpush2.bf16.msra.mxu0 0
    %716 = vmatprep.mubr.bf16.mxu0 0
    %717 = vmatmul.mubr.bf16.gmra.mxu0 %v682
    %v718 = vpop.f32.mrf.mxu0
    %v719 = vadd.f32 %v654, %v718
    %v720 = vpop.f32.mrf.mxu0
    %v721 = vpop.f32.mrf.mxu0
    %v722 = vadd.f32 %v654, %v721
    %v723 = vpop.f32.mrf.mxu0
    %724 = vdwg.mxu0
    %v725 = vmax.f32 %v719, 0.0
    %v726 = vmax.f32 %v722, 0.0
    %v727 = vpack.c.bf16 %v726, %v725
    %v728 = vld [vmem:[%s5] sm:$0xf]
    %v729 = vld [vmem:[%s5 + $0x4] sm:$0xf]
    %v730 = vld [vmem:[%s5 + $0x8] sm:$0xf]
    %v731 = vld [vmem:[%s5 + $0xc] sm:$0xf]
    %v732 = vld [vmem:[%s6] sm:$0x1]
    %v734 = vlaneseq
    %v735 = vshrl.u32 %v734, 7
    %v736 = vsub.s32 0, %v735
    %v737 = vrot.slane %v732, %v736
    %v743 = vunpack.c.l.b16 %v728
    %v744 = vunpack.c.l.b16 %v729
    %v745 = vunpack.c.l.b16 %v730
    %v746 = vunpack.c.l.b16 %v731
    %v747 = vpack.c.b16 %v744, %v743
    %v748 = vpack.c.b16 %v746, %v745
    %vm751 = vcmask 261120
    %v753 = vsel %vm751, %v727, 0
    %755 = vmatprep.subr.bf16.mxu0 0
    %756 = vmatpush1.bf16.msra.mxu0 0
    %757 = vmatprep.subr.bf16.mxu0 0
    %758 = vmatpush1.bf16.msra.mxu0 0
    %759 = vmatprep.subr.bf16.mxu0 0
    %760 = vmatpush1.bf16.msra.mxu0 0
    %761 = vmatprep.subr.bf16.mxu0 0
    %762 = vmatpush1.bf16.msra.mxu0 0
    %763 = vmatprep.subr.bf16.mxu0 0
    %764 = vmatpush1.bf16.msra.mxu0 0
    %765 = vmatprep.subr.bf16.mxu0 0
    %766 = vmatpush1.bf16.msra.mxu0 0
    %767 = vmatprep.subr.bf16.mxu0 0
    %768 = vmatpush1.bf16.msra.mxu0 %v748
    %769 = vmatprep.subr.bf16.mxu0 0
    %770 = vmatpush1.bf16.msra.mxu0 %v747
    %771 = vmatprep.subr.bf16.mxu0 0
    %772 = vmatpush2.bf16.msra.mxu0 0
    %773 = vmatprep.subr.bf16.mxu0 0
    %774 = vmatpush2.bf16.msra.mxu0 0
    %775 = vmatprep.subr.bf16.mxu0 0
    %776 = vmatpush2.bf16.msra.mxu0 0
    %777 = vmatprep.subr.bf16.mxu0 0
    %778 = vmatpush2.bf16.msra.mxu0 0
    %779 = vmatprep.subr.bf16.mxu0 0
    %780 = vmatpush2.bf16.msra.mxu0 0
    %781 = vmatprep.subr.bf16.mxu0 0
    %782 = vmatpush2.bf16.msra.mxu0 0
    %783 = vmatprep.subr.bf16.mxu0 0
    %784 = vmatpush2.bf16.msra.mxu0 0
    %785 = vmatprep.subr.bf16.mxu0 0
    %786 = vmatpush2.bf16.msra.mxu0 0
    %787 = vmatprep.mubr.bf16.mxu0 0
    %788 = vmatmul.mubr.bf16.gmra.mxu0 %v753
    %v789 = vpop.f32.mrf.mxu0
    %v790 = vadd.f32 %v737, %v789
    %v791 = vpop.f32.mrf.mxu0
    %v792 = vpop.f32.mrf.mxu0
    %v793 = vadd.f32 %v737, %v792
    %v794 = vpop.f32.mrf.mxu0
    %795 = vdwg.mxu0
    %796 = vst.msk [vmem:[#allocation2] sm:$0xff] %vm470, %v790
    %797 = vst.msk [vmem:[#allocation2 + $0x8] sm:$0xff] %vm470, %v793
    // Predicated region
    $region30: #{tpu_custom_call.1} parent=1 // pred_check
      _
    $region31: #{tpu_custom_call.1} parent=1 // pred_check_branch
      %799 = sbr.rel (0) target = $region33
    $region32: #{tpu_custom_call.1} parent=1 // pred_region
      %s801 = ssub.s32 256, 128
      %802 = vsyncadd [#allocation3], %s801
      %s803 = sshll.u32 [#allocation2], 4
      %s804 = int_to_ptr.vmem [resolvable:$true] %s803
      %809 = dma.vmem_to_hbm [thread:$0]  %s804, 128, %s7, [#allocation3], 128, 128, 8
    $region33: #{tpu_custom_call.1} parent=1 // pred_fallthru
      _
    // Predicated region
    $region34: #{tpu_custom_call.1} parent=1 // pred_check
      _
    $region35: #{tpu_custom_call.1} parent=1 // pred_check_branch
      %811 = sbr.rel (0) target = $region37
    $region36: #{tpu_custom_call.1} parent=1 // pred_region
      %812 = dma.done [#allocation3], 256
    $region37: #{tpu_custom_call.1} parent=1 // pred_fallthru
      _
    %813 = vsyncpa [#allocation3], 1

</llo_original>
